<compile_context>
chip_gen: v6e
topology: v6e:2x2x1
jax: 0.10.0
libtpu: 0.0.40
codegen_flags: <defaults>
</compile_context>

<pallas_src>
import jax
import jax.numpy as jnp
from jax.experimental import pallas as pl
from jax.experimental.pallas import tpu as pltpu

_LANE = 128


def _sublane(dtype) -> int:
    # sublane packing granularity for the second-to-last tile dim
    return {4: 8, 2: 16, 1: 32}.get(jnp.dtype(dtype).itemsize, 8)


def _round_up(a: int, b: int) -> int:
    return ((a + b - 1) // b) * b


def _basic_norm_lane_dense_kernel(eps_ref, x_ref, m_ref, o_ref):
    """Lane-dense path.

    x_ref / o_ref: (TILE_R, 128) tiles; each lane-row holds G = 128 // C
    consecutive original rows, one per C-lane group.
    m_ref: (128, 128) block-diagonal matrix, M[i, j] = 1/C iff i//C == j//C.
    The matmul both reduces each C-lane group and broadcasts the group mean
    back across its lanes, so no keepdims / XLU reduce / broadcast is needed.
    eps_ref: scalar-prefetch SMEM ref holding exp(log_eps) (shape (1,)).
    """
    x = x_ref[...].astype(jnp.float32)
    mean_sq = jnp.dot(
        x * x,
        m_ref[...],
        precision=jax.lax.Precision.HIGHEST,
        preferred_element_type=jnp.float32,
    )
    scales = jax.lax.rsqrt(mean_sq + eps_ref[0])
    o_ref[...] = (x * scales).astype(o_ref.dtype)


def _basic_norm_generic_kernel(eps_ref, x_ref, o_ref):
    """Fallback path: (TILE_R, C) tiles, reduce over the channel (last) axis."""
    x = x_ref[...].astype(jnp.float32)
    mean_sq = jnp.mean(x * x, axis=-1, keepdims=True)
    scales = jax.lax.rsqrt(mean_sq + eps_ref[0])
    o_ref[...] = (x * scales).astype(o_ref.dtype)


def basic_norm(
    x: jax.Array,
    log_eps: jax.Array,
    *,
    channel_dim: int = -1,
    max_tile_rows: int = 2048,
) -> jax.Array:
    """BasicNorm forward. x: (..., num_channels) (or any layout via channel_dim).
    log_eps: scalar parameter storing log(eps)."""
    # Move channel axis last if needed (module default is already -1).
    ndim = x.ndim
    cdim = channel_dim if channel_dim >= 0 else channel_dim + ndim
    moved = cdim != ndim - 1
    if moved:
        x = jnp.moveaxis(x, cdim, -1)

    orig_shape = x.shape
    C = orig_shape[-1]
    R = 1
    for d in orig_shape[:-1]:
        R *= d
    x2d = x.reshape(R, C)

    # Hoist the transcendental: pass exp(log_eps) as the scalar-prefetch value.
    eps_exp = jnp.exp(jnp.asarray(log_eps, dtype=jnp.float32)).reshape((1,))

    sub = _sublane(x.dtype)
    lane_dense = (C <= _LANE) and (_LANE % C == 0)

    if lane_dense:
        G = _LANE // C  # original rows packed per lane-row
        r_lane = pl.cdiv(R, G)
        tile_r = min(_round_up(max_tile_rows, sub), _round_up(r_lane, sub))
        r_lane_pad = _round_up(r_lane, tile_r)
        r_pad = r_lane_pad * G
        if r_pad != R:
            x2d = jnp.pad(x2d, ((0, r_pad - R), (0, 0)))
        # Same contiguous bytes, lane-dense view.
        x_lane = x2d.reshape(r_lane_pad, _LANE)

        # Block-diagonal reduce+broadcast matrix: 1/C where i//C == j//C.
        ii = jax.lax.broadcasted_iota(jnp.int32, (_LANE, _LANE), 0) // C
        jj = jax.lax.broadcasted_iota(jnp.int32, (_LANE, _LANE), 1) // C
        m = jnp.where(ii == jj, jnp.float32(1.0 / C), jnp.float32(0.0))

        out_lane = pl.pallas_call(
            _basic_norm_lane_dense_kernel,
            out_shape=jax.ShapeDtypeStruct((r_lane_pad, _LANE), x.dtype),
            grid_spec=pltpu.PrefetchScalarGridSpec(
                num_scalar_prefetch=1,
                grid=(r_lane_pad // tile_r,),
                in_specs=[
                    pl.BlockSpec((tile_r, _LANE), lambda i, eps: (i, 0)),
                    pl.BlockSpec((_LANE, _LANE), lambda i, eps: (0, 0)),
                ],
                out_specs=pl.BlockSpec((tile_r, _LANE), lambda i, eps: (i, 0)),
            ),
            compiler_params=pltpu.CompilerParams(
                dimension_semantics=("parallel",),
            ),
        )(eps_exp, x_lane, m)
        out2d = out_lane.reshape(r_pad, C)[:R]
    else:
        # Generic path (C not a divisor of 128): full-C blocks, big row tiles,
        # capped at ~4 MiB per tile.
        itemsize = jnp.dtype(x.dtype).itemsize
        cap = max(sub, (4 * 1024 * 1024) // max(1, C * itemsize))
        tile_r = min(_round_up(min(max_tile_rows, cap), sub), _round_up(R, sub))
        r_pad = _round_up(R, tile_r)
        if r_pad != R:
            x2d = jnp.pad(x2d, ((0, r_pad - R), (0, 0)))

        out2d = pl.pallas_call(
            _basic_norm_generic_kernel,
            out_shape=jax.ShapeDtypeStruct((r_pad, C), x.dtype),
            grid_spec=pltpu.PrefetchScalarGridSpec(
                num_scalar_prefetch=1,
                grid=(r_pad // tile_r,),
                in_specs=[pl.BlockSpec((tile_r, C), lambda i, eps: (i, 0))],
                out_specs=pl.BlockSpec((tile_r, C), lambda i, eps: (i, 0)),
            ),
            compiler_params=pltpu.CompilerParams(
                dimension_semantics=("parallel",),
            ),
        )(eps_exp, x2d)
        out2d = out2d[:R]

    out = out2d.reshape(orig_shape)
    if moved:
        out = jnp.moveaxis(out, -1, cdim)
    return out


if __name__ == "__main__":
    # Deterministic parameter init mirroring BasicNorm.__init__:
    #   num_channels=32, channel_dim=-1, eps=0.25 -> parameter stores log(0.25)
    num_channels = 32
    eps_init = 0.25
    log_eps = jnp.log(jnp.asarray(eps_init, dtype=jnp.float32))

    key = jax.random.PRNGKey(0)
    # x: (batch=2, seq=8, hidden=32), channel-last layout.
    x = jax.random.normal(key, (2, 8, num_channels), dtype=jnp.float32)

    out = basic_norm(x, log_eps)
    out = jax.block_until_ready(out)

    # Reference check (plain JAX) — same math as the PyTorch eval-mode forward.
    ref = x * jax.lax.rsqrt(
        jnp.mean(x * x, axis=-1, keepdims=True) + jnp.exp(log_eps)
    )
    assert out.shape == x.shape
    assert jnp.allclose(out, ref, atol=1e-5, rtol=1e-4), float(
        jnp.max(jnp.abs(out - ref))
    )

    # Extra check: a non-tile-aligned row count (no divisibility assert anymore).
    x2 = jax.random.normal(jax.random.PRNGKey(1), (3, 7, num_channels), jnp.float32)
    out2 = jax.block_until_ready(basic_norm(x2, log_eps))
    ref2 = x2 * jax.lax.rsqrt(
        jnp.mean(x2 * x2, axis=-1, keepdims=True) + jnp.exp(log_eps)
    )
    assert jnp.allclose(out2, ref2, atol=1e-5, rtol=1e-4)

    print("KERNEL_OK")
</pallas_src>

<mosaic_0001>
module attributes {stable_mosaic.version = 11 : i64} {
  func.func @_basic_norm_lane_dense_kernel(%arg0: i32, %arg1: memref<1xf32, #tpu.memory_space<smem>>, %arg2: memref<8x128xf32, #tpu.memory_space<vmem>>, %arg3: memref<128x128xf32, #tpu.memory_space<vmem>>, %arg4: memref<8x128xf32, #tpu.memory_space<vmem>>) attributes {dimension_semantics = [#tpu.dimension_semantics<parallel>], iteration_bounds = array<i64: 1>, scalar_prefetch = 1 : i64, scratch_operands = 0 : i64, tpu.core_type = #tpu.core_type<tc>, window_params = [{transform_indices = @transform_0, window_bounds = array<i64: 8, 128>}, {pipeline_mode = #tpu.pipeline_mode<synchronous>, transform_indices = @transform_1, window_bounds = array<i64: 128, 128>}, {transform_indices = @transform_2, window_bounds = array<i64: 8, 128>}]} {
    %c0 = arith.constant 0 : index
    %c0_0 = arith.constant 0 : index
    %0 = vector.load %arg2[%c0, %c0_0] : memref<8x128xf32, #tpu.memory_space<vmem>>, vector<8x128xf32>
    %1 = arith.mulf %0, %0 : vector<8x128xf32>
    %c0_1 = arith.constant 0 : index
    %c0_2 = arith.constant 0 : index
    %2 = vector.load %arg3[%c0_1, %c0_2] : memref<128x128xf32, #tpu.memory_space<vmem>>, vector<128x128xf32>
    %cst = arith.constant dense<0.000000e+00> : vector<8x128xf32>
    %3 = tpu.matmul %1, %2, %cst {dimension_numbers = #tpu.dot_dimension_numbers<[1], [0], [0], [1], [0, 0, 1, 1], [], []>, precision = #tpu.contract_precision<fp32>} : vector<8x128xf32>, vector<128x128xf32>, vector<8x128xf32> -> vector<8x128xf32>
    %c0_3 = arith.constant 0 : index
    %4 = memref.load %arg1[%c0_3] : memref<1xf32, #tpu.memory_space<smem>>
    %5 = vector.broadcast %4 : f32 to vector<8x128xf32>
    %6 = arith.addf %3, %5 : vector<8x128xf32>
    %7 = math.rsqrt %6 : vector<8x128xf32>
    %8 = arith.mulf %0, %7 : vector<8x128xf32>
    %c0_4 = arith.constant 0 : index
    %c0_5 = arith.constant 0 : index
    %9 = vector.load %arg4[%c0_4, %c0_5] : memref<8x128xf32, #tpu.memory_space<vmem>>, vector<8x128xf32>
    tpu.vector_store %arg4[%c0_4, %c0_5], %8 {strides = array<i32>} : memref<8x128xf32, #tpu.memory_space<vmem>>, vector<8x128xf32>,
    return
  }
  func.func @transform_0(%arg0: i32, %arg1: memref<1xf32, #tpu.memory_space<smem>>) -> (i32, i32) {
    %c0_i32 = arith.constant 0 : i32
    %c0_i32_0 = arith.constant 0 : i32
    return %arg0, %c0_i32 : i32, i32
  }
  func.func @transform_1(%arg0: i32, %arg1: memref<1xf32, #tpu.memory_space<smem>>) -> (i32, i32) {
    %c0_i32 = arith.constant 0 : i32
    %c0_i32_0 = arith.constant 0 : i32
    %c0_i32_1 = arith.constant 0 : i32
    return %c0_i32, %c0_i32_0 : i32, i32
  }
  func.func @transform_2(%arg0: i32, %arg1: memref<1xf32, #tpu.memory_space<smem>>) -> (i32, i32) {
    %c0_i32 = arith.constant 0 : i32
    %c0_i32_0 = arith.constant 0 : i32
    return %arg0, %c0_i32 : i32, i32
  }
}

</mosaic_0001>

<llo_original>
// kernel: tpu_custom_call.1
$region0: #{tpu_custom_call.1}
  #allocation0 [shape = 'u32[]', space=smem, size = 0x4, offset = 0x4, fixed_abs, tag = 'smem constant byte address 0x4 - core index']
  #allocation1 [shape = 'u32[144,128]{1,0:T(1,128)}', space=vmem, size = 0x12000, scoped, tag = 'internal scratch']
  #allocation2 [shape = 's32[1]{0}', space=sflag, size = 0x4, scoped, tag = 'scoped memory for tpu_custom_call.1']
  #allocation3 [shape = 'f32[1]{0:T(128)S(6)}', space=smem, size = 0x200, scoped, tag = 'prefetched SMEM operand 0']
  %s0 = inlined_call_operand.<no memory space> [shape: f32[1], index: 0, kind: input, shape index: {}]
  %s1 = inlined_call_operand.hbm [shape: f32[8,128], index: 1, kind: input, shape index: {}]
  %s2 = inlined_call_operand.hbm [shape: f32[128,128], index: 2, kind: input, shape index: {}]
  %s3 = inlined_call_operand.hbm [shape: f32[8,128], index: 3, kind: output, shape index: {}]
  %s4 = sld [smem:[#allocation0]]
  $region26: #{tpu_custom_call.1} parent=0
    _
  %s6 = ssub.s32 1, %s4
  %s7 = scalar_select 0, %s6, %s4
  %8 = sst [smem:[#allocation3]] %s0
  $region1: #{tpu_custom_call.1} parent=0
    #allocation4 [shape = 'u8[4096]{0}', space=vmem, size = 0x1000, scoped, tag = 'input window, operand 1, single buffered']
    #allocation5 [shape = 's32[1]{0}', space=sflag, size = 0x4, scoped, tag = 'scoped memory for tpu_custom_call.1']
    #allocation6 [shape = 's32[1]{0}', space=sflag, size = 0x4, scoped, tag = 'scoped memory for tpu_custom_call.1']
    #allocation7 [shape = 'u8[65536]{0}', space=vmem, size = 0x10000, scoped, tag = 'input window, operand 2, single buffered']
    #allocation8 [shape = 's32[1]{0}', space=sflag, size = 0x4, scoped, tag = 'scoped memory for tpu_custom_call.1']
    #allocation9 [shape = 'u8[4096]{0}', space=vmem, size = 0x1000, scoped, tag = 'output window, operand 0, single buffered']
    %9 = vsyncpa [#allocation5], 0
    %10 = vsyncpa [#allocation8], 0
    %11 = vsyncpa [#allocation6], 0
    // Predicated region
    $region2: #{tpu_custom_call.1} parent=1 // pred_check
      _
    $region3: #{tpu_custom_call.1} parent=1 // pred_check_branch
      %13 = sbr.rel (0) target = $region5
    $region4: #{tpu_custom_call.1} parent=1 // pred_region
      %s15 = ssub.s32 128, 128
      %16 = vsyncadd [#allocation5], %s15
      %s18 = sshll.u32 [#allocation4], 4
      %s19 = int_to_ptr.vmem [resolvable:$true] %s18
      %21 = dma.hbm_to_vmem [thread:$0]  %s1, 128, %s19, [#allocation5]
    $region5: #{tpu_custom_call.1} parent=1 // pred_fallthru
      _
    // Predicated region
    $region6: #{tpu_custom_call.1} parent=1 // pred_check
      _
    $region7: #{tpu_custom_call.1} parent=1 // pred_check_branch
      %23 = sbr.rel (0) target = $region9
    $region8: #{tpu_custom_call.1} parent=1 // pred_region
      %s25 = ssub.s32 2048, 2048
      %26 = vsyncadd [#allocation8], %s25
      %s27 = sshll.u32 [#allocation7], 4
      %s28 = int_to_ptr.vmem [resolvable:$true] %s27
      %33 = dma.hbm_to_vmem [thread:$0]  %s2, 2048, %s28, [#allocation8], 128, 128, 8
    $region9: #{tpu_custom_call.1} parent=1 // pred_fallthru
      _
    // Predicated region
    $region10: #{tpu_custom_call.1} parent=1 // pred_check
      _
    $region11: #{tpu_custom_call.1} parent=1 // pred_check_branch
      %35 = sbr.rel (0) target = $region13
    $region12: #{tpu_custom_call.1} parent=1 // pred_region
      %36 = dma.done [#allocation5], 128
    $region13: #{tpu_custom_call.1} parent=1 // pred_fallthru
      _
    // Predicated region
    $region14: #{tpu_custom_call.1} parent=1 // pred_check
      _
    $region15: #{tpu_custom_call.1} parent=1 // pred_check_branch
      %38 = sbr.rel (0) target = $region17
    $region16: #{tpu_custom_call.1} parent=1 // pred_region
      %39 = dma.done [#allocation8], 2048
    $region17: #{tpu_custom_call.1} parent=1 // pred_fallthru
      _
    %v40 = vld [vmem:[#allocation4] sm:$0xff]
    %v41 = vmul.f32 %v40, %v40
    %v42 = vld [vmem:[#allocation7] sm:$0xff]
    %v43 = vld [vmem:[#allocation7 + $0x8] sm:$0xff]
    %v44 = vld [vmem:[#allocation7 + $0x10] sm:$0xff]
    %v45 = vld [vmem:[#allocation7 + $0x18] sm:$0xff]
    %v46 = vld [vmem:[#allocation7 + $0x20] sm:$0xff]
    %v47 = vld [vmem:[#allocation7 + $0x28] sm:$0xff]
    %v48 = vld [vmem:[#allocation7 + $0x30] sm:$0xff]
    %v49 = vld [vmem:[#allocation7 + $0x38] sm:$0xff]
    %v50 = vld [vmem:[#allocation7 + $0x40] sm:$0xff]
    %v51 = vld [vmem:[#allocation7 + $0x48] sm:$0xff]
    %v52 = vld [vmem:[#allocation7 + $0x50] sm:$0xff]
    %v53 = vld [vmem:[#allocation7 + $0x58] sm:$0xff]
    %v54 = vld [vmem:[#allocation7 + $0x60] sm:$0xff]
    %v55 = vld [vmem:[#allocation7 + $0x68] sm:$0xff]
    %v56 = vld [vmem:[#allocation7 + $0x70] sm:$0xff]
    %v57 = vld [vmem:[#allocation7 + $0x78] sm:$0xff]
    %s58 = sld [smem:[#allocation3]]
    %v59 = vstv %s58
    %60 = vmatprep.subr.mxu0 0.0
    %v61 = vand.u32 %v57, 4294901760
    %62 = vmatpush1.msra.mxu0 %v61
    %63 = vmatprep.subr.mxu0 0.0
    %v64 = vand.u32 %v56, 4294901760
    %65 = vmatpush1.msra.mxu0 %v64
    %66 = vmatprep.subr.mxu0 0.0
    %v67 = vand.u32 %v55, 4294901760
    %68 = vmatpush1.msra.mxu0 %v67
    %69 = vmatprep.subr.mxu0 0.0
    %v70 = vand.u32 %v54, 4294901760
    %71 = vmatpush1.msra.mxu0 %v70
    %72 = vmatprep.subr.mxu0 0.0
    %v73 = vand.u32 %v53, 4294901760
    %74 = vmatpush1.msra.mxu0 %v73
    %75 = vmatprep.subr.mxu0 0.0
    %v76 = vand.u32 %v52, 4294901760
    %77 = vmatpush1.msra.mxu0 %v76
    %78 = vmatprep.subr.mxu0 0.0
    %v79 = vand.u32 %v51, 4294901760
    %80 = vmatpush1.msra.mxu0 %v79
    %81 = vmatprep.subr.mxu0 0.0
    %v82 = vand.u32 %v50, 4294901760
    %83 = vmatpush1.msra.mxu0 %v82
    %84 = vmatprep.subr.mxu0 0.0
    %v85 = vand.u32 %v49, 4294901760
    %86 = vmatpush1.msra.mxu0 %v85
    %87 = vmatprep.subr.mxu0 0.0
    %v88 = vand.u32 %v48, 4294901760
    %89 = vmatpush1.msra.mxu0 %v88
    %90 = vmatprep.subr.mxu0 0.0
    %v91 = vand.u32 %v47, 4294901760
    %92 = vmatpush1.msra.mxu0 %v91
    %93 = vmatprep.subr.mxu0 0.0
    %v94 = vand.u32 %v46, 4294901760
    %95 = vmatpush1.msra.mxu0 %v94
    %96 = vmatprep.subr.mxu0 0.0
    %v97 = vand.u32 %v45, 4294901760
    %98 = vmatpush1.msra.mxu0 %v97
    %99 = vmatprep.subr.mxu0 0.0
    %v100 = vand.u32 %v44, 4294901760
    %101 = vmatpush1.msra.mxu0 %v100
    %102 = vmatprep.subr.mxu0 0.0
    %v103 = vand.u32 %v43, 4294901760
    %104 = vmatpush1.msra.mxu0 %v103
    %105 = vmatprep.subr.mxu0 0.0
    %v106 = vand.u32 %v42, 4294901760
    %107 = vmatpush1.msra.mxu0 %v106
    %108 = vmatprep.subr.mxu0 0.0
    %109 = vmatpush2.msra.mxu0 0.0
    %110 = vmatprep.subr.mxu0 0.0
    %111 = vmatpush2.msra.mxu0 0.0
    %112 = vmatprep.subr.mxu0 0.0
    %113 = vmatpush2.msra.mxu0 0.0
    %114 = vmatprep.subr.mxu0 0.0
    %115 = vmatpush2.msra.mxu0 0.0
    %116 = vmatprep.subr.mxu0 0.0
    %117 = vmatpush2.msra.mxu0 0.0
    %118 = vmatprep.subr.mxu0 0.0
    %119 = vmatpush2.msra.mxu0 0.0
    %120 = vmatprep.subr.mxu0 0.0
    %121 = vmatpush2.msra.mxu0 0.0
    %122 = vmatprep.subr.mxu0 0.0
    %123 = vmatpush2.msra.mxu0 0.0
    %124 = vmatprep.subr.mxu0 0.0
    %125 = vmatpush2.msra.mxu0 0.0
    %126 = vmatprep.subr.mxu0 0.0
    %127 = vmatpush2.msra.mxu0 0.0
    %128 = vmatprep.subr.mxu0 0.0
    %129 = vmatpush2.msra.mxu0 0.0
    %130 = vmatprep.subr.mxu0 0.0
    %131 = vmatpush2.msra.mxu0 0.0
    %132 = vmatprep.subr.mxu0 0.0
    %133 = vmatpush2.msra.mxu0 0.0
    %134 = vmatprep.subr.mxu0 0.0
    %135 = vmatpush2.msra.mxu0 0.0
    %136 = vmatprep.subr.mxu0 0.0
    %137 = vmatpush2.msra.mxu0 0.0
    %138 = vmatprep.subr.mxu0 0.0
    %139 = vmatpush2.msra.mxu0 0.0
    %140 = vmatprep.mubr.f32.mxu0 0.0
    %v141 = vand.u32 %v41, 4294901760
    %v142 = vsub.f32 %v41, %v141
    %v143 = vand.u32 %v142, 4294901760
    %v144 = vsub.f32 %v142, %v143
    %v145 = vand.u32 %v144, 4294901760
    %146 = vmatmul.mubr.f32.gmra.mxu0 %v145
    %v147 = vpop.f32.mrf.mxu0
    %v148 = vadd.f32 %v59, %v147
    %v149 = vpop.f32.mrf.mxu0
    %150 = vdwg.mxu0
    %151 = vmatprep.subr.mxu0 0.0
    %v152 = vand.u32 %v57, 4294901760
    %v153 = vsub.f32 %v57, %v152
    %v154 = vand.u32 %v153, 4294901760
    %v155 = vsub.f32 %v153, %v154
    %v156 = vand.u32 %v155, 4294901760
    %157 = vmatpush1.msra.mxu0 %v156
    %158 = vmatprep.subr.mxu0 0.0
    %v159 = vand.u32 %v56, 4294901760
    %v160 = vsub.f32 %v56, %v159
    %v161 = vand.u32 %v160, 4294901760
    %v162 = vsub.f32 %v160, %v161
    %v163 = vand.u32 %v162, 4294901760
    %164 = vmatpush1.msra.mxu0 %v163
    %165 = vmatprep.subr.mxu0 0.0
    %v166 = vand.u32 %v55, 4294901760
    %v167 = vsub.f32 %v55, %v166
    %v168 = vand.u32 %v167, 4294901760
    %v169 = vsub.f32 %v167, %v168
    %v170 = vand.u32 %v169, 4294901760
    %171 = vmatpush1.msra.mxu0 %v170
    %172 = vmatprep.subr.mxu0 0.0
    %v173 = vand.u32 %v54, 4294901760
    %v174 = vsub.f32 %v54, %v173
    %v175 = vand.u32 %v174, 4294901760
    %v176 = vsub.f32 %v174, %v175
    %v177 = vand.u32 %v176, 4294901760
    %178 = vmatpush1.msra.mxu0 %v177
    %179 = vmatprep.subr.mxu0 0.0
    %v180 = vand.u32 %v53, 4294901760
    %v181 = vsub.f32 %v53, %v180
    %v182 = vand.u32 %v181, 4294901760
    %v183 = vsub.f32 %v181, %v182
    %v184 = vand.u32 %v183, 4294901760
    %185 = vmatpush1.msra.mxu0 %v184
    %186 = vmatprep.subr.mxu0 0.0
    %v187 = vand.u32 %v52, 4294901760
    %v188 = vsub.f32 %v52, %v187
    %v189 = vand.u32 %v188, 4294901760
    %v190 = vsub.f32 %v188, %v189
    %v191 = vand.u32 %v190, 4294901760
    %192 = vmatpush1.msra.mxu0 %v191
    %193 = vmatprep.subr.mxu0 0.0
    %v194 = vand.u32 %v51, 4294901760
    %v195 = vsub.f32 %v51, %v194
    %v196 = vand.u32 %v195, 4294901760
    %v197 = vsub.f32 %v195, %v196
    %v198 = vand.u32 %v197, 4294901760
    %199 = vmatpush1.msra.mxu0 %v198
    %200 = vmatprep.subr.mxu0 0.0
    %v201 = vand.u32 %v50, 4294901760
    %v202 = vsub.f32 %v50, %v201
    %v203 = vand.u32 %v202, 4294901760
    %v204 = vsub.f32 %v202, %v203
    %v205 = vand.u32 %v204, 4294901760
    %206 = vmatpush1.msra.mxu0 %v205
    %207 = vmatprep.subr.mxu0 0.0
    %v208 = vand.u32 %v49, 4294901760
    %v209 = vsub.f32 %v49, %v208
    %v210 = vand.u32 %v209, 4294901760
    %v211 = vsub.f32 %v209, %v210
    %v212 = vand.u32 %v211, 4294901760
    %213 = vmatpush1.msra.mxu0 %v212
    %214 = vmatprep.subr.mxu0 0.0
    %v215 = vand.u32 %v48, 4294901760
    %v216 = vsub.f32 %v48, %v215
    %v217 = vand.u32 %v216, 4294901760
    %v218 = vsub.f32 %v216, %v217
    %v219 = vand.u32 %v218, 4294901760
    %220 = vmatpush1.msra.mxu0 %v219
    %221 = vmatprep.subr.mxu0 0.0
    %v222 = vand.u32 %v47, 4294901760
    %v223 = vsub.f32 %v47, %v222
    %v224 = vand.u32 %v223, 4294901760
    %v225 = vsub.f32 %v223, %v224
    %v226 = vand.u32 %v225, 4294901760
    %227 = vmatpush1.msra.mxu0 %v226
    %228 = vmatprep.subr.mxu0 0.0
    %v229 = vand.u32 %v46, 4294901760
    %v230 = vsub.f32 %v46, %v229
    %v231 = vand.u32 %v230, 4294901760
    %v232 = vsub.f32 %v230, %v231
    %v233 = vand.u32 %v232, 4294901760
    %234 = vmatpush1.msra.mxu0 %v233
    %235 = vmatprep.subr.mxu0 0.0
    %v236 = vand.u32 %v45, 4294901760
    %v237 = vsub.f32 %v45, %v236
    %v238 = vand.u32 %v237, 4294901760
    %v239 = vsub.f32 %v237, %v238
    %v240 = vand.u32 %v239, 4294901760
    %241 = vmatpush1.msra.mxu0 %v240
    %242 = vmatprep.subr.mxu0 0.0
    %v243 = vand.u32 %v44, 4294901760
    %v244 = vsub.f32 %v44, %v243
    %v245 = vand.u32 %v244, 4294901760
    %v246 = vsub.f32 %v244, %v245
    %v247 = vand.u32 %v246, 4294901760
    %248 = vmatpush1.msra.mxu0 %v247
    %249 = vmatprep.subr.mxu0 0.0
    %v250 = vand.u32 %v43, 4294901760
    %v251 = vsub.f32 %v43, %v250
    %v252 = vand.u32 %v251, 4294901760
    %v253 = vsub.f32 %v251, %v252
    %v254 = vand.u32 %v253, 4294901760
    %255 = vmatpush1.msra.mxu0 %v254
    %256 = vmatprep.subr.mxu0 0.0
    %v257 = vand.u32 %v42, 4294901760
    %v258 = vsub.f32 %v42, %v257
    %v259 = vand.u32 %v258, 4294901760
    %v260 = vsub.f32 %v258, %v259
    %v261 = vand.u32 %v260, 4294901760
    %262 = vmatpush1.msra.mxu0 %v261
    %263 = vmatprep.subr.mxu0 0.0
    %264 = vmatpush2.msra.mxu0 0.0
    %265 = vmatprep.subr.mxu0 0.0
    %266 = vmatpush2.msra.mxu0 0.0
    %267 = vmatprep.subr.mxu0 0.0
    %268 = vmatpush2.msra.mxu0 0.0
    %269 = vmatprep.subr.mxu0 0.0
    %270 = vmatpush2.msra.mxu0 0.0
    %271 = vmatprep.subr.mxu0 0.0
    %272 = vmatpush2.msra.mxu0 0.0
    %273 = vmatprep.subr.mxu0 0.0
    %274 = vmatpush2.msra.mxu0 0.0
    %275 = vmatprep.subr.mxu0 0.0
    %276 = vmatpush2.msra.mxu0 0.0
    %277 = vmatprep.subr.mxu0 0.0
    %278 = vmatpush2.msra.mxu0 0.0
    %279 = vmatprep.subr.mxu0 0.0
    %280 = vmatpush2.msra.mxu0 0.0
    %281 = vmatprep.subr.mxu0 0.0
    %282 = vmatpush2.msra.mxu0 0.0
    %283 = vmatprep.subr.mxu0 0.0
    %284 = vmatpush2.msra.mxu0 0.0
    %285 = vmatprep.subr.mxu0 0.0
    %286 = vmatpush2.msra.mxu0 0.0
    %287 = vmatprep.subr.mxu0 0.0
    %288 = vmatpush2.msra.mxu0 0.0
    %289 = vmatprep.subr.mxu0 0.0
    %290 = vmatpush2.msra.mxu0 0.0
    %291 = vmatprep.subr.mxu0 0.0
    %292 = vmatpush2.msra.mxu0 0.0
    %293 = vmatprep.subr.mxu0 0.0
    %294 = vmatpush2.msra.mxu0 0.0
    %295 = vmatprep.mubr.f32.mxu0 0.0
    %v296 = vand.u32 %v41, 4294901760
    %297 = vmatmul.mubr.f32.gmra.mxu0 %v296
    %v298 = vpop.f32.mrf.mxu0
    %v299 = vadd.f32 %v148, %v298
    %v300 = vpop.f32.mrf.mxu0
    %301 = vdwg.mxu0
    %302 = vmatprep.subr.mxu0 0.0
    %v303 = vand.u32 %v57, 4294901760
    %v304 = vsub.f32 %v57, %v303
    %305 = vmatpush1.msra.mxu0 %v304
    %306 = vmatprep.subr.mxu0 0.0
    %v307 = vand.u32 %v56, 4294901760
    %v308 = vsub.f32 %v56, %v307
    %309 = vmatpush1.msra.mxu0 %v308
    %310 = vmatprep.subr.mxu0 0.0
    %v311 = vand.u32 %v55, 4294901760
    %v312 = vsub.f32 %v55, %v311
    %313 = vmatpush1.msra.mxu0 %v312
    %314 = vmatprep.subr.mxu0 0.0
    %v315 = vand.u32 %v54, 4294901760
    %v316 = vsub.f32 %v54, %v315
    %317 = vmatpush1.msra.mxu0 %v316
    %318 = vmatprep.subr.mxu0 0.0
    %v319 = vand.u32 %v53, 4294901760
    %v320 = vsub.f32 %v53, %v319
    %321 = vmatpush1.msra.mxu0 %v320
    %322 = vmatprep.subr.mxu0 0.0
    %v323 = vand.u32 %v52, 4294901760
    %v324 = vsub.f32 %v52, %v323
    %325 = vmatpush1.msra.mxu0 %v324
    %326 = vmatprep.subr.mxu0 0.0
    %v327 = vand.u32 %v51, 4294901760
    %v328 = vsub.f32 %v51, %v327
    %329 = vmatpush1.msra.mxu0 %v328
    %330 = vmatprep.subr.mxu0 0.0
    %v331 = vand.u32 %v50, 4294901760
    %v332 = vsub.f32 %v50, %v331
    %333 = vmatpush1.msra.mxu0 %v332
    %334 = vmatprep.subr.mxu0 0.0
    %v335 = vand.u32 %v49, 4294901760
    %v336 = vsub.f32 %v49, %v335
    %337 = vmatpush1.msra.mxu0 %v336
    %338 = vmatprep.subr.mxu0 0.0
    %v339 = vand.u32 %v48, 4294901760
    %v340 = vsub.f32 %v48, %v339
    %341 = vmatpush1.msra.mxu0 %v340
    %342 = vmatprep.subr.mxu0 0.0
    %v343 = vand.u32 %v47, 4294901760
    %v344 = vsub.f32 %v47, %v343
    %345 = vmatpush1.msra.mxu0 %v344
    %346 = vmatprep.subr.mxu0 0.0
    %v347 = vand.u32 %v46, 4294901760
    %v348 = vsub.f32 %v46, %v347
    %349 = vmatpush1.msra.mxu0 %v348
    %350 = vmatprep.subr.mxu0 0.0
    %v351 = vand.u32 %v45, 4294901760
    %v352 = vsub.f32 %v45, %v351
    %353 = vmatpush1.msra.mxu0 %v352
    %354 = vmatprep.subr.mxu0 0.0
    %v355 = vand.u32 %v44, 4294901760
    %v356 = vsub.f32 %v44, %v355
    %357 = vmatpush1.msra.mxu0 %v356
    %358 = vmatprep.subr.mxu0 0.0
    %v359 = vand.u32 %v43, 4294901760
    %v360 = vsub.f32 %v43, %v359
    %361 = vmatpush1.msra.mxu0 %v360
    %362 = vmatprep.subr.mxu0 0.0
    %v363 = vand.u32 %v42, 4294901760
    %v364 = vsub.f32 %v42, %v363
    %365 = vmatpush1.msra.mxu0 %v364
    %366 = vmatprep.subr.mxu0 0.0
    %367 = vmatpush2.msra.mxu0 0.0
    %368 = vmatprep.subr.mxu0 0.0
    %369 = vmatpush2.msra.mxu0 0.0
    %370 = vmatprep.subr.mxu0 0.0
    %371 = vmatpush2.msra.mxu0 0.0
    %372 = vmatprep.subr.mxu0 0.0
    %373 = vmatpush2.msra.mxu0 0.0
    %374 = vmatprep.subr.mxu0 0.0
    %375 = vmatpush2.msra.mxu0 0.0
    %376 = vmatprep.subr.mxu0 0.0
    %377 = vmatpush2.msra.mxu0 0.0
    %378 = vmatprep.subr.mxu0 0.0
    %379 = vmatpush2.msra.mxu0 0.0
    %380 = vmatprep.subr.mxu0 0.0
    %381 = vmatpush2.msra.mxu0 0.0
    %382 = vmatprep.subr.mxu0 0.0
    %383 = vmatpush2.msra.mxu0 0.0
    %384 = vmatprep.subr.mxu0 0.0
    %385 = vmatpush2.msra.mxu0 0.0
    %386 = vmatprep.subr.mxu0 0.0
    %387 = vmatpush2.msra.mxu0 0.0
    %388 = vmatprep.subr.mxu0 0.0
    %389 = vmatpush2.msra.mxu0 0.0
    %390 = vmatprep.subr.mxu0 0.0
    %391 = vmatpush2.msra.mxu0 0.0
    %392 = vmatprep.subr.mxu0 0.0
    %393 = vmatpush2.msra.mxu0 0.0
    %394 = vmatprep.subr.mxu0 0.0
    %395 = vmatpush2.msra.mxu0 0.0
    %396 = vmatprep.subr.mxu0 0.0
    %397 = vmatpush2.msra.mxu0 0.0
    %398 = vmatprep.mubr.f32.mxu0 0.0
    %v399 = vand.u32 %v41, 4294901760
    %v400 = vsub.f32 %v41, %v399
    %401 = vmatmul.mubr.f32.gmra.mxu0 %v400
    %v402 = vpop.f32.mrf.mxu0
    %v403 = vadd.f32 %v299, %v402
    %v404 = vpop.f32.mrf.mxu0
    %405 = vdwg.mxu0
    %406 = vmatprep.subr.mxu0 0.0
    %v407 = vand.u32 %v57, 4294901760
    %408 = vmatpush1.msra.mxu0 %v407
    %409 = vmatprep.subr.mxu0 0.0
    %v410 = vand.u32 %v56, 4294901760
    %411 = vmatpush1.msra.mxu0 %v410
    %412 = vmatprep.subr.mxu0 0.0
    %v413 = vand.u32 %v55, 4294901760
    %414 = vmatpush1.msra.mxu0 %v413
    %415 = vmatprep.subr.mxu0 0.0
    %v416 = vand.u32 %v54, 4294901760
    %417 = vmatpush1.msra.mxu0 %v416
    %418 = vmatprep.subr.mxu0 0.0
    %v419 = vand.u32 %v53, 4294901760
    %420 = vmatpush1.msra.mxu0 %v419
    %421 = vmatprep.subr.mxu0 0.0
    %v422 = vand.u32 %v52, 4294901760
    %423 = vmatpush1.msra.mxu0 %v422
    %424 = vmatprep.subr.mxu0 0.0
    %v425 = vand.u32 %v51, 4294901760
    %426 = vmatpush1.msra.mxu0 %v425
    %427 = vmatprep.subr.mxu0 0.0
    %v428 = vand.u32 %v50, 4294901760
    %429 = vmatpush1.msra.mxu0 %v428
    %430 = vmatprep.subr.mxu0 0.0
    %v431 = vand.u32 %v49, 4294901760
    %432 = vmatpush1.msra.mxu0 %v431
    %433 = vmatprep.subr.mxu0 0.0
    %v434 = vand.u32 %v48, 4294901760
    %435 = vmatpush1.msra.mxu0 %v434
    %436 = vmatprep.subr.mxu0 0.0
    %v437 = vand.u32 %v47, 4294901760
    %438 = vmatpush1.msra.mxu0 %v437
    %439 = vmatprep.subr.mxu0 0.0
    %v440 = vand.u32 %v46, 4294901760
    %441 = vmatpush1.msra.mxu0 %v440
    %442 = vmatprep.subr.mxu0 0.0
    %v443 = vand.u32 %v45, 4294901760
    %444 = vmatpush1.msra.mxu0 %v443
    %445 = vmatprep.subr.mxu0 0.0
    %v446 = vand.u32 %v44, 4294901760
    %447 = vmatpush1.msra.mxu0 %v446
    %448 = vmatprep.subr.mxu0 0.0
    %v449 = vand.u32 %v43, 4294901760
    %450 = vmatpush1.msra.mxu0 %v449
    %451 = vmatprep.subr.mxu0 0.0
    %v452 = vand.u32 %v42, 4294901760
    %453 = vmatpush1.msra.mxu0 %v452
    %454 = vmatprep.subr.mxu0 0.0
    %455 = vmatpush2.msra.mxu0 0.0
    %456 = vmatprep.subr.mxu0 0.0
    %457 = vmatpush2.msra.mxu0 0.0
    %458 = vmatprep.subr.mxu0 0.0
    %459 = vmatpush2.msra.mxu0 0.0
    %460 = vmatprep.subr.mxu0 0.0
    %461 = vmatpush2.msra.mxu0 0.0
    %462 = vmatprep.subr.mxu0 0.0
    %463 = vmatpush2.msra.mxu0 0.0
    %464 = vmatprep.subr.mxu0 0.0
    %465 = vmatpush2.msra.mxu0 0.0
    %466 = vmatprep.subr.mxu0 0.0
    %467 = vmatpush2.msra.mxu0 0.0
    %468 = vmatprep.subr.mxu0 0.0
    %469 = vmatpush2.msra.mxu0 0.0
    %470 = vmatprep.subr.mxu0 0.0
    %471 = vmatpush2.msra.mxu0 0.0
    %472 = vmatprep.subr.mxu0 0.0
    %473 = vmatpush2.msra.mxu0 0.0
    %474 = vmatprep.subr.mxu0 0.0
    %475 = vmatpush2.msra.mxu0 0.0
    %476 = vmatprep.subr.mxu0 0.0
    %477 = vmatpush2.msra.mxu0 0.0
    %478 = vmatprep.subr.mxu0 0.0
    %479 = vmatpush2.msra.mxu0 0.0
    %480 = vmatprep.subr.mxu0 0.0
    %481 = vmatpush2.msra.mxu0 0.0
    %482 = vmatprep.subr.mxu0 0.0
    %483 = vmatpush2.msra.mxu0 0.0
    %484 = vmatprep.subr.mxu0 0.0
    %485 = vmatpush2.msra.mxu0 0.0
    %486 = vmatprep.mubr.f32.mxu0 0.0
    %v487 = vand.u32 %v41, 4294901760
    %v488 = vsub.f32 %v41, %v487
    %v489 = vand.u32 %v488, 4294901760
    %490 = vmatmul.mubr.f32.gmra.mxu0 %v489
    %v491 = vpop.f32.mrf.mxu0
    %v492 = vadd.f32 %v403, %v491
    %v493 = vpop.f32.mrf.mxu0
    %494 = vdwg.mxu0
    %495 = vmatprep.subr.mxu0 0.0
    %v496 = vand.u32 %v57, 4294901760
    %v497 = vsub.f32 %v57, %v496
    %v498 = vand.u32 %v497, 4294901760
    %499 = vmatpush1.msra.mxu0 %v498
    %500 = vmatprep.subr.mxu0 0.0
    %v501 = vand.u32 %v56, 4294901760
    %v502 = vsub.f32 %v56, %v501
    %v503 = vand.u32 %v502, 4294901760
    %504 = vmatpush1.msra.mxu0 %v503
    %505 = vmatprep.subr.mxu0 0.0
    %v506 = vand.u32 %v55, 4294901760
    %v507 = vsub.f32 %v55, %v506
    %v508 = vand.u32 %v507, 4294901760
    %509 = vmatpush1.msra.mxu0 %v508
    %510 = vmatprep.subr.mxu0 0.0
    %v511 = vand.u32 %v54, 4294901760
    %v512 = vsub.f32 %v54, %v511
    %v513 = vand.u32 %v512, 4294901760
    %514 = vmatpush1.msra.mxu0 %v513
    %515 = vmatprep.subr.mxu0 0.0
    %v516 = vand.u32 %v53, 4294901760
    %v517 = vsub.f32 %v53, %v516
    %v518 = vand.u32 %v517, 4294901760
    %519 = vmatpush1.msra.mxu0 %v518
    %520 = vmatprep.subr.mxu0 0.0
    %v521 = vand.u32 %v52, 4294901760
    %v522 = vsub.f32 %v52, %v521
    %v523 = vand.u32 %v522, 4294901760
    %524 = vmatpush1.msra.mxu0 %v523
    %525 = vmatprep.subr.mxu0 0.0
    %v526 = vand.u32 %v51, 4294901760
    %v527 = vsub.f32 %v51, %v526
    %v528 = vand.u32 %v527, 4294901760
    %529 = vmatpush1.msra.mxu0 %v528
    %530 = vmatprep.subr.mxu0 0.0
    %v531 = vand.u32 %v50, 4294901760
    %v532 = vsub.f32 %v50, %v531
    %v533 = vand.u32 %v532, 4294901760
    %534 = vmatpush1.msra.mxu0 %v533
    %535 = vmatprep.subr.mxu0 0.0
    %v536 = vand.u32 %v49, 4294901760
    %v537 = vsub.f32 %v49, %v536
    %v538 = vand.u32 %v537, 4294901760
    %539 = vmatpush1.msra.mxu0 %v538
    %540 = vmatprep.subr.mxu0 0.0
    %v541 = vand.u32 %v48, 4294901760
    %v542 = vsub.f32 %v48, %v541
    %v543 = vand.u32 %v542, 4294901760
    %544 = vmatpush1.msra.mxu0 %v543
    %545 = vmatprep.subr.mxu0 0.0
    %v546 = vand.u32 %v47, 4294901760
    %v547 = vsub.f32 %v47, %v546
    %v548 = vand.u32 %v547, 4294901760
    %549 = vmatpush1.msra.mxu0 %v548
    %550 = vmatprep.subr.mxu0 0.0
    %v551 = vand.u32 %v46, 4294901760
    %v552 = vsub.f32 %v46, %v551
    %v553 = vand.u32 %v552, 4294901760
    %554 = vmatpush1.msra.mxu0 %v553
    %555 = vmatprep.subr.mxu0 0.0
    %v556 = vand.u32 %v45, 4294901760
    %v557 = vsub.f32 %v45, %v556
    %v558 = vand.u32 %v557, 4294901760
    %559 = vmatpush1.msra.mxu0 %v558
    %560 = vmatprep.subr.mxu0 0.0
    %v561 = vand.u32 %v44, 4294901760
    %v562 = vsub.f32 %v44, %v561
    %v563 = vand.u32 %v562, 4294901760
    %564 = vmatpush1.msra.mxu0 %v563
    %565 = vmatprep.subr.mxu0 0.0
    %v566 = vand.u32 %v43, 4294901760
    %v567 = vsub.f32 %v43, %v566
    %v568 = vand.u32 %v567, 4294901760
    %569 = vmatpush1.msra.mxu0 %v568
    %570 = vmatprep.subr.mxu0 0.0
    %v571 = vand.u32 %v42, 4294901760
    %v572 = vsub.f32 %v42, %v571
    %v573 = vand.u32 %v572, 4294901760
    %574 = vmatpush1.msra.mxu0 %v573
    %575 = vmatprep.subr.mxu0 0.0
    %576 = vmatpush2.msra.mxu0 0.0
    %577 = vmatprep.subr.mxu0 0.0
    %578 = vmatpush2.msra.mxu0 0.0
    %579 = vmatprep.subr.mxu0 0.0
    %580 = vmatpush2.msra.mxu0 0.0
    %581 = vmatprep.subr.mxu0 0.0
    %582 = vmatpush2.msra.mxu0 0.0
    %583 = vmatprep.subr.mxu0 0.0
    %584 = vmatpush2.msra.mxu0 0.0
    %585 = vmatprep.subr.mxu0 0.0
    %586 = vmatpush2.msra.mxu0 0.0
    %587 = vmatprep.subr.mxu0 0.0
    %588 = vmatpush2.msra.mxu0 0.0
    %589 = vmatprep.subr.mxu0 0.0
    %590 = vmatpush2.msra.mxu0 0.0
    %591 = vmatprep.subr.mxu0 0.0
    %592 = vmatpush2.msra.mxu0 0.0
    %593 = vmatprep.subr.mxu0 0.0
    %594 = vmatpush2.msra.mxu0 0.0
    %595 = vmatprep.subr.mxu0 0.0
    %596 = vmatpush2.msra.mxu0 0.0
    %597 = vmatprep.subr.mxu0 0.0
    %598 = vmatpush2.msra.mxu0 0.0
    %599 = vmatprep.subr.mxu0 0.0
    %600 = vmatpush2.msra.mxu0 0.0
    %601 = vmatprep.subr.mxu0 0.0
    %602 = vmatpush2.msra.mxu0 0.0
    %603 = vmatprep.subr.mxu0 0.0
    %604 = vmatpush2.msra.mxu0 0.0
    %605 = vmatprep.subr.mxu0 0.0
    %606 = vmatpush2.msra.mxu0 0.0
    %607 = vmatprep.mubr.f32.mxu0 0.0
    %v608 = vand.u32 %v41, 4294901760
    %609 = vmatmul.mubr.f32.gmra.mxu0 %v608
    %v610 = vpop.f32.mrf.mxu0
    %v611 = vadd.f32 %v492, %v610
    %v612 = vpop.f32.mrf.mxu0
    %613 = vdwg.mxu0
    %614 = vmatprep.subr.mxu0 0.0
    %v615 = vand.u32 %v57, 4294901760
    %616 = vmatpush1.msra.mxu0 %v615
    %617 = vmatprep.subr.mxu0 0.0
    %v618 = vand.u32 %v56, 4294901760
    %619 = vmatpush1.msra.mxu0 %v618
    %620 = vmatprep.subr.mxu0 0.0
    %v621 = vand.u32 %v55, 4294901760
    %622 = vmatpush1.msra.mxu0 %v621
    %623 = vmatprep.subr.mxu0 0.0
    %v624 = vand.u32 %v54, 4294901760
    %625 = vmatpush1.msra.mxu0 %v624
    %626 = vmatprep.subr.mxu0 0.0
    %v627 = vand.u32 %v53, 4294901760
    %628 = vmatpush1.msra.mxu0 %v627
    %629 = vmatprep.subr.mxu0 0.0
    %v630 = vand.u32 %v52, 4294901760
    %631 = vmatpush1.msra.mxu0 %v630
    %632 = vmatprep.subr.mxu0 0.0
    %v633 = vand.u32 %v51, 4294901760
    %634 = vmatpush1.msra.mxu0 %v633
    %635 = vmatprep.subr.mxu0 0.0
    %v636 = vand.u32 %v50, 4294901760
    %637 = vmatpush1.msra.mxu0 %v636
    %638 = vmatprep.subr.mxu0 0.0
    %v639 = vand.u32 %v49, 4294901760
    %640 = vmatpush1.msra.mxu0 %v639
    %641 = vmatprep.subr.mxu0 0.0
    %v642 = vand.u32 %v48, 4294901760
    %643 = vmatpush1.msra.mxu0 %v642
    %644 = vmatprep.subr.mxu0 0.0
    %v645 = vand.u32 %v47, 4294901760
    %646 = vmatpush1.msra.mxu0 %v645
    %647 = vmatprep.subr.mxu0 0.0
    %v648 = vand.u32 %v46, 4294901760
    %649 = vmatpush1.msra.mxu0 %v648
    %650 = vmatprep.subr.mxu0 0.0
    %v651 = vand.u32 %v45, 4294901760
    %652 = vmatpush1.msra.mxu0 %v651
    %653 = vmatprep.subr.mxu0 0.0
    %v654 = vand.u32 %v44, 4294901760
    %655 = vmatpush1.msra.mxu0 %v654
    %656 = vmatprep.subr.mxu0 0.0
    %v657 = vand.u32 %v43, 4294901760
    %658 = vmatpush1.msra.mxu0 %v657
    %659 = vmatprep.subr.mxu0 0.0
    %v660 = vand.u32 %v42, 4294901760
    %661 = vmatpush1.msra.mxu0 %v660
    %662 = vmatprep.subr.mxu0 0.0
    %663 = vmatpush2.msra.mxu0 0.0
    %664 = vmatprep.subr.mxu0 0.0
    %665 = vmatpush2.msra.mxu0 0.0
    %666 = vmatprep.subr.mxu0 0.0
    %667 = vmatpush2.msra.mxu0 0.0
    %668 = vmatprep.subr.mxu0 0.0
    %669 = vmatpush2.msra.mxu0 0.0
    %670 = vmatprep.subr.mxu0 0.0
    %671 = vmatpush2.msra.mxu0 0.0
    %672 = vmatprep.subr.mxu0 0.0
    %673 = vmatpush2.msra.mxu0 0.0
    %674 = vmatprep.subr.mxu0 0.0
    %675 = vmatpush2.msra.mxu0 0.0
    %676 = vmatprep.subr.mxu0 0.0
    %677 = vmatpush2.msra.mxu0 0.0
    %678 = vmatprep.subr.mxu0 0.0
    %679 = vmatpush2.msra.mxu0 0.0
    %680 = vmatprep.subr.mxu0 0.0
    %681 = vmatpush2.msra.mxu0 0.0
    %682 = vmatprep.subr.mxu0 0.0
    %683 = vmatpush2.msra.mxu0 0.0
    %684 = vmatprep.subr.mxu0 0.0
    %685 = vmatpush2.msra.mxu0 0.0
    %686 = vmatprep.subr.mxu0 0.0
    %687 = vmatpush2.msra.mxu0 0.0
    %688 = vmatprep.subr.mxu0 0.0
    %689 = vmatpush2.msra.mxu0 0.0
    %690 = vmatprep.subr.mxu0 0.0
    %691 = vmatpush2.msra.mxu0 0.0
    %692 = vmatprep.subr.mxu0 0.0
    %693 = vmatpush2.msra.mxu0 0.0
    %694 = vmatprep.mubr.f32.mxu0 0.0
    %v695 = vand.u32 %v41, 4294901760
    %696 = vmatmul.mubr.f32.gmra.mxu0 %v695
    %v697 = vpop.f32.mrf.mxu0
    %v698 = vadd.f32 %v611, %v697
    %v699 = vpop.f32.mrf.mxu0
    %700 = vdwg.mxu0
    %v701 = vrsqrt.pop %v698
    %v702 = vmul.f32 %v40, %v701
    %703 = vst [vmem:[#allocation9] sm:$0xff] %v702
    // Predicated region
    $region18: #{tpu_custom_call.1} parent=1 // pred_check
      _
    $region19: #{tpu_custom_call.1} parent=1 // pred_check_branch
      %705 = sbr.rel (0) target = $region21
    $region20: #{tpu_custom_call.1} parent=1 // pred_region
      %s707 = ssub.s32 128, 128
      %708 = vsyncadd [#allocation6], %s707
      %s710 = sshll.u32 [#allocation9], 4
      %s711 = int_to_ptr.vmem [resolvable:$true] %s710
      %713 = dma.vmem_to_hbm [thread:$0]  %s711, 128, %s3, [#allocation6]
    $region21: #{tpu_custom_call.1} parent=1 // pred_fallthru
      _
    // Predicated region
    $region22: #{tpu_custom_call.1} parent=1 // pred_check
      _
    $region23: #{tpu_custom_call.1} parent=1 // pred_check_branch
      %715 = sbr.rel (0) target = $region25
    $region24: #{tpu_custom_call.1} parent=1 // pred_region
      %716 = dma.done [#allocation6], 128
    $region25: #{tpu_custom_call.1} parent=1 // pred_fallthru
      _
    %717 = vsyncpa [#allocation5], 1
    %718 = vsyncpa [#allocation8], 1
    %719 = vsyncpa [#allocation6], 1

</llo_original>
